<compile_context>
chip_gen: v5e
topology: v5e:2x2
jax: 0.10.0
libtpu: 0.0.40
codegen_flags: <defaults>
</compile_context>

<pallas_src>
import functools

import jax
import jax.numpy as jnp
from jax.experimental import pallas as pl
from jax.experimental.pallas import tpu as pltpu


def _dma_identity_kernel(x_hbm, o_hbm, sems, *, n_chunks, chunk):
    """Copy x_hbm -> o_hbm with n_chunks concurrent HBM->HBM DMAs."""
    if n_chunks == 1:
        cp = pltpu.make_async_copy(x_hbm, o_hbm, sems.at[0])
        cp.start()
        cp.wait()
        return

    copies = []
    for i in range(n_chunks):
        sl = pl.ds(i * chunk, chunk)
        cp = pltpu.make_async_copy(x_hbm.at[sl], o_hbm.at[sl], sems.at[i])
        cp.start()
        copies.append(cp)
    for cp in copies:
        cp.wait()


def _pick_num_chunks(shape, dtype):
    """Split into up to 4 concurrent DMAs for large arrays, else 1."""
    min_bytes_per_dma = 8 * 1024 * 1024  # only worth splitting for MiB-scale copies
    nbytes = 1
    for d in shape:
        nbytes *= d
    nbytes *= jnp.dtype(dtype).itemsize
    if len(shape) == 0 or nbytes < 2 * min_bytes_per_dma:
        return 1
    lead = shape[0]
    for n in (4, 2):
        if lead % n == 0 and nbytes // n >= min_bytes_per_dma:
            return n
    return 1


@jax.jit
def unet_forward(x):
    """Pallas implementation of UNet.forward: returns x unchanged.

    Pure HBM->HBM DMA copy; no padding, no VMEM staging, no grid loop.
    """
    n_chunks = _pick_num_chunks(x.shape, x.dtype)
    chunk = (x.shape[0] // n_chunks) if x.ndim > 0 and n_chunks > 1 else 0
    nbytes = x.size * jnp.dtype(x.dtype).itemsize

    kernel = functools.partial(
        _dma_identity_kernel, n_chunks=n_chunks, chunk=chunk
    )

    return pl.pallas_call(
        kernel,
        out_shape=jax.ShapeDtypeStruct(x.shape, x.dtype),
        in_specs=[pl.BlockSpec(memory_space=pl.ANY)],
        out_specs=pl.BlockSpec(memory_space=pl.ANY),
        scratch_shapes=[pltpu.SemaphoreType.DMA((n_chunks,))],
        cost_estimate=pl.CostEstimate(
            flops=0,
            transcendentals=0,
            bytes_accessed=2 * nbytes,  # one read + one write of the array
        ),
    )(x)


if __name__ == "__main__":
    # UNet.__init__ defines no parameters, so there is nothing to initialize.
    key = jax.random.PRNGKey(0)
    x = jax.random.normal(key, (2, 4, 16, 16), dtype=jnp.float32)  # NCHW

    y = unet_forward(x)
    y = jax.block_until_ready(y)

    assert y.shape == x.shape and y.dtype == x.dtype
    assert bool(jnp.array_equal(y, x))
    print("KERNEL_OK")
</pallas_src>

<mosaic_0001>
module attributes {stable_mosaic.version = 11 : i64} {
  func.func @_dma_identity_kernel(%arg0: memref<2x4x16x16xf32, #tpu.memory_space<any>>, %arg1: memref<2x4x16x16xf32, #tpu.memory_space<any>>, %arg2: memref<1x!tpu.dma_semaphore, #tpu.memory_space<semaphore_mem>>) attributes {dimension_semantics = [], scalar_prefetch = 0 : i64, scratch_operands = 1 : i64, tpu.core_type = #tpu.core_type<tc>} {
    %c0_i32 = arith.constant 0 : i32
    %0 = tpu.memref_slice %arg2[%c0_i32] : memref<1x!tpu.dma_semaphore, #tpu.memory_space<semaphore_mem>> -> memref<1x!tpu.dma_semaphore, #tpu.memory_space<semaphore_mem>>
    %1 = tpu.memref_squeeze %0 : memref<1x!tpu.dma_semaphore, #tpu.memory_space<semaphore_mem>> -> memref<!tpu.dma_semaphore, #tpu.memory_space<semaphore_mem>>
    tpu.enqueue_dma source(%arg0 : memref<2x4x16x16xf32, #tpu.memory_space<any>>) target(%arg1 : memref<2x4x16x16xf32, #tpu.memory_space<any>>) target_semaphore(%1 : memref<!tpu.dma_semaphore, #tpu.memory_space<semaphore_mem>>)
    %c0_i32_0 = arith.constant 0 : i32
    %2 = tpu.memref_slice %arg2[%c0_i32_0] : memref<1x!tpu.dma_semaphore, #tpu.memory_space<semaphore_mem>> -> memref<1x!tpu.dma_semaphore, #tpu.memory_space<semaphore_mem>>
    %3 = tpu.memref_squeeze %2 : memref<1x!tpu.dma_semaphore, #tpu.memory_space<semaphore_mem>> -> memref<!tpu.dma_semaphore, #tpu.memory_space<semaphore_mem>>
    tpu.wait_dma2 semaphore(%3 : memref<!tpu.dma_semaphore, #tpu.memory_space<semaphore_mem>>) src(%arg0 : memref<2x4x16x16xf32, #tpu.memory_space<any>>) dst(%arg1 : memref<2x4x16x16xf32, #tpu.memory_space<any>>)
    return
  }
}

</mosaic_0001>

<llo_original>
// kernel: unet_forward.1
$region0: #{unet_forward.1}
  #allocation0 [shape = 'u32[]', space=smem, size = 0x4, offset = 0x4, fixed_abs, tag = 'smem constant byte address 0x4 - core index']
  #allocation1 [shape = 'u32[72,128]{1,0:T(1,128)}', space=vmem, size = 0x9000, scoped, tag = 'internal scratch']
  #allocation2 [shape = 's32[1]{0}', space=sflag, size = 0x4, scoped, tag = 'scratch operand']
  #allocation3 [shape = 's32[]', space=sflag, size = 0x4, offset = 0, fixed_abs, tag = 'sflag constant byte address 0x0 - dummy sync flag']
  #allocation4 [shape = 'u32[0]{0}', space=smem, size = 0, offset = 0, fixed_abs, tag = 'smem constant byte address 0x0 - null']
  %s0 = inlined_call_operand.hbm [shape: f32[2,4,16,16], index: 0, kind: input, shape index: {}]
  %s1 = inlined_call_operand.hbm [shape: f32[2,4,16,16], index: 1, kind: output, shape index: {}]
  %s2 = sld [smem:[#allocation0]]
  $region2: #{unet_forward.1} parent=0
    _
  %s4 = ssub.s32 1, %s2
  %s5 = scalar_select 0, %s4, %s2
  %s7 = sshll.u32 1, 14
  %s8 = sxor.u32 4294967295, %s7
  %s10 = sshll.u32 %s0, 4
  %s11 = int_to_ptr.hbm [resolvable:$true] %s10
  %s12 = sshll.u32 %s1, 4
  %s13 = int_to_ptr.hbm [resolvable:$true] %s12
  %16 = dma.general %s11, 2048, %s13, [#allocation2], [#allocation3], [#allocation4], 0, 0
  %s17 = smul.u32 2, 4
  %s18 = smul.u32 %s17, 16
  %s19 = smul.u32 %s18, 1
  %s20 = sshll.u32 %s19, 4
  %21 = dma.done [#allocation2], %s20
  %22 = vsyncmov [#allocation2]
  %s23 = vpop.sfrf %22
  %p24 = scmp.eq.s32.totalorder %s23, 0
  %p25 = pneg %p24
  %27 = shalt.err (%p25)

</llo_original>
